<compile_context>
chip_gen: v7x
topology: tpu7x:2x2x1
jax: 0.10.0
libtpu: 0.0.40
codegen_flags: <defaults>
</compile_context>

<pallas_src>
import functools

import jax
import jax.numpy as jnp
from jax.experimental import pallas as pl
from jax.experimental.pallas import tpu as pltpu


def _round_up(x, mult):
    return ((x + mult - 1) // mult) * mult


def _layer(h, w, b):
    """Linear + ReLU: bf16 x bf16 MXU matmul, f32 accum, fused bf16 cast."""
    y = jnp.dot(h, w, preferred_element_type=jnp.float32)
    return jnp.maximum(y + b, 0.0).astype(jnp.bfloat16)


def _mlp_kernel(*refs, hidden_layers):
    if hidden_layers > 1:
        x_ref, w0_ref, b0_ref, wh_ref, bh_ref, wo_ref, bo_ref, o_ref = refs
    else:
        x_ref, w0_ref, b0_ref, wo_ref, bo_ref, o_ref = refs
        wh_ref = bh_ref = None

    rows = x_ref.shape[0]
    half = rows // 2  # row_tile is a multiple of 128 -> half is 8-aligned

    # Two independent row sub-tiles (A / B).  Interleaving their per-layer
    # computations breaks the strict layer->layer dependency chain so the
    # scheduler can overlap sub-tile B's matmul with sub-tile A's
    # bias+ReLU+cast epilogue (hides the VPU work under the MXU).
    w0 = w0_ref[...]
    b0 = b0_ref[...]
    ha = _layer(x_ref[:half], w0, b0)
    hb = _layer(x_ref[half:], w0, b0)
    for i in range(hidden_layers - 1):
        w = wh_ref[i]
        b = bh_ref[i]
        ha = _layer(ha, w, b)
        hb = _layer(hb, w, b)
    wo = wo_ref[...]
    bo = bo_ref[...]
    oa = jnp.dot(ha, wo, preferred_element_type=jnp.float32) + bo
    ob = jnp.dot(hb, wo, preferred_element_type=jnp.float32) + bo
    o_ref[:half] = oa.astype(o_ref.dtype)
    o_ref[half:] = ob.astype(o_ref.dtype)


def prepare_params(params):
    """One-time weight prep (bf16 MXU operands). Call once, reuse per frame."""
    w0, b0, wh, bh, wo, bo = params
    return (w0.astype(jnp.bfloat16), b0.astype(jnp.float32),
            wh.astype(jnp.bfloat16), bh.astype(jnp.float32),
            wo.astype(jnp.bfloat16), bo.astype(jnp.float32))


def mlp_forward(x, prepared_params, *, row_tile=None, vmem_limit_bytes=None):
    """x: (batch, N_v, input_dim) f32 -> (batch, N_v, output_dim) f32."""
    w0, b0, wh, bh, wo, bo = prepared_params
    batch, n_v, input_dim = x.shape
    hidden_dim = w0.shape[1]
    output_dim = wo.shape[1]
    hidden_layers = wh.shape[0] + 1
    out_dtype = x.dtype

    m = batch * n_v
    if row_tile is None:
        # Large tiles amortize the ~0.35 us per-grid-step overhead.  Clamp so
        # the grid keeps >= 2 steps where possible (v7x shards the "parallel"
        # axis across its 2 TensorCores).
        row_tile = 1024
        if m <= 2 * row_tile:
            row_tile = _round_up(pl.cdiv(m, 2), 128) if m > 128 else 128
    row_tile = max(128, _round_up(row_tile, 128))
    m_pad = _round_up(m, row_tile)
    grid = (m_pad // row_tile,)

    # Rough per-step VMEM budget; raise the scoped limit only if an explicit
    # oversized tile needs it (budget against v7x's 64 MiB physical VMEM).
    weight_bytes = ((w0.size + wh.size + wo.size) * 2
                    + (b0.size + bh.size + bo.size) * 4)
    per_step_bytes = (2 * row_tile * input_dim * 2      # bf16 x, double-buffered
                      + 2 * row_tile * output_dim * 4   # f32 out, double-buffered
                      + 2 * weight_bytes                # weights (worst case)
                      + 2 * row_tile * hidden_dim * 4)  # live activations headroom
    if vmem_limit_bytes is None and per_step_bytes > 12 * 1024 * 1024:
        vmem_limit_bytes = min(_round_up(per_step_bytes, 1 << 20) + (4 << 20),
                               48 * 1024 * 1024)
    compiler_params = pltpu.CompilerParams(
        dimension_semantics=("parallel",),
        vmem_limit_bytes=vmem_limit_bytes)

    # Flatten rows, zero-pad M so the grid divides evenly, cast once to bf16.
    x2d = x.reshape(m, input_dim)
    if m_pad != m:
        x2d = jnp.pad(x2d, ((0, m_pad - m), (0, 0)))
    x2d = x2d.astype(jnp.bfloat16)

    flops = 2 * m_pad * (input_dim * hidden_dim
                         + (hidden_layers - 1) * hidden_dim * hidden_dim
                         + hidden_dim * output_dim)
    bytes_accessed = int(x2d.size * 2 + weight_bytes
                         + m_pad * output_dim * jnp.dtype(out_dtype).itemsize)
    cost = pl.CostEstimate(flops=int(flops), transcendentals=0,
                           bytes_accessed=bytes_accessed)

    def inv(shape):
        # Grid-invariant block (weights / biases): Pallas does not re-DMA it.
        return pl.BlockSpec(shape, lambda i: (0,) * len(shape))

    in_specs = [pl.BlockSpec((row_tile, input_dim), lambda i: (i, 0)),
                inv((input_dim, hidden_dim)),
                inv((1, hidden_dim))]
    args = [x2d, w0, b0]
    if hidden_layers > 1:
        in_specs += [inv((hidden_layers - 1, hidden_dim, hidden_dim)),
                     inv((hidden_layers - 1, 1, hidden_dim))]
        args += [wh, bh]
    in_specs += [inv((hidden_dim, output_dim)), inv((1, output_dim))]
    args += [wo, bo]

    out2d = pl.pallas_call(
        functools.partial(_mlp_kernel, hidden_layers=hidden_layers),
        out_shape=jax.ShapeDtypeStruct((m_pad, output_dim), out_dtype),
        grid_spec=pltpu.PrefetchScalarGridSpec(
            num_scalar_prefetch=0,
            grid=grid,
            in_specs=in_specs,
            # Real column count (full last dim): masked store, no padded slab.
            out_specs=pl.BlockSpec((row_tile, output_dim), lambda i: (i, 0)),
        ),
        compiler_params=compiler_params,
        cost_estimate=cost,
    )(*args)

    if m_pad != m:
        out2d = out2d[:m]
    return out2d.reshape(batch, n_v, output_dim)


def init_params(key, input_dim, output_dim, hidden_dim, hidden_layers):
    """Deterministic init mimicking nn.Linear default (uniform +/- 1/sqrt(fan_in))."""
    ks = jax.random.split(key, 2 * (hidden_layers + 1))

    def lin(kw, kb, fan_in, fan_out):
        bound = 1.0 / jnp.sqrt(fan_in)
        w = jax.random.uniform(kw, (fan_in, fan_out), jnp.float32, -bound, bound)
        b = jax.random.uniform(kb, (1, fan_out), jnp.float32, -bound, bound)
        return w, b

    w0, b0 = lin(ks[0], ks[1], input_dim, hidden_dim)
    whs, bhs = [], []
    for i in range(hidden_layers - 1):
        w, b = lin(ks[2 + 2 * i], ks[3 + 2 * i], hidden_dim, hidden_dim)
        whs.append(w[None])
        bhs.append(b[None])
    wh = (jnp.concatenate(whs, axis=0) if whs
          else jnp.zeros((0, hidden_dim, hidden_dim), jnp.float32))
    bh = (jnp.concatenate(bhs, axis=0) if bhs
          else jnp.zeros((0, 1, hidden_dim), jnp.float32))
    wo, bo = lin(ks[-2], ks[-1], hidden_dim, output_dim)
    return (w0, b0, wh, bh, wo, bo)


def mlp_reference(x, params):
    """Pure-f32 reference matching the PyTorch module semantics."""
    w0, b0, wh, bh, wo, bo = params
    batch, n_v, _ = x.shape
    h = x.reshape(batch * n_v, -1)
    h = jnp.maximum(h @ w0 + b0, 0.0)
    for i in range(wh.shape[0]):
        h = jnp.maximum(h @ wh[i] + bh[i], 0.0)
    out = h @ wo + bo
    return out.reshape(batch, n_v, -1)


if __name__ == "__main__":
    # Small, shape-consistent example (module default is hidden_dim=256,
    # hidden_layers=8; scaled down here).
    batch, n_v = 2, 16
    input_dim, output_dim = 16, 8
    hidden_dim, hidden_layers = 32, 4

    key = jax.random.PRNGKey(0)
    kx, kp = jax.random.split(key)
    x = jax.random.normal(kx, (batch, n_v, input_dim), jnp.float32)

    params = init_params(kp, input_dim, output_dim, hidden_dim, hidden_layers)
    prepared = prepare_params(params)   # one-time weight prep (hoisted)

    out = jax.block_until_ready(mlp_forward(x, prepared))
    ref = mlp_reference(x, params)
    assert out.shape == (batch, n_v, output_dim)
    # bf16 MXU inputs with f32 accumulation -> relaxed tolerance vs f32 ref.
    assert jnp.allclose(out, ref, atol=5e-2, rtol=5e-2), \
        float(jnp.max(jnp.abs(out - ref)))

    # hidden_layers == 1 path (no stacked hidden weights) also exercised.
    params1 = init_params(kp, input_dim, output_dim, hidden_dim, 1)
    out1 = jax.block_until_ready(mlp_forward(x, prepare_params(params1)))
    ref1 = mlp_reference(x, params1)
    assert jnp.allclose(out1, ref1, atol=5e-2, rtol=5e-2), \
        float(jnp.max(jnp.abs(out1 - ref1)))

    print("KERNEL_OK")
</pallas_src>

<mosaic_0001>
module attributes {stable_mosaic.version = 11 : i64} {
  func.func @_mlp_kernel(%arg0: i32, %arg1: memref<128x16xbf16, #tpu.memory_space<vmem>>, %arg2: memref<16x32xbf16, #tpu.memory_space<vmem>>, %arg3: memref<1x32xf32, #tpu.memory_space<vmem>>, %arg4: memref<3x32x32xbf16, #tpu.memory_space<vmem>>, %arg5: memref<3x1x32xf32, #tpu.memory_space<vmem>>, %arg6: memref<32x8xbf16, #tpu.memory_space<vmem>>, %arg7: memref<1x8xf32, #tpu.memory_space<vmem>>, %arg8: memref<128x8xf32, #tpu.memory_space<vmem>>) attributes {dimension_semantics = [#tpu.dimension_semantics<parallel>], iteration_bounds = array<i64: 1>, scalar_prefetch = 0 : i64, scratch_operands = 0 : i64, tpu.core_type = #tpu.core_type<tc>, window_params = [{transform_indices = @transform_0, window_bounds = array<i64: 128, 16>}, {pipeline_mode = #tpu.pipeline_mode<synchronous>, transform_indices = @transform_1, window_bounds = array<i64: 16, 32>}, {pipeline_mode = #tpu.pipeline_mode<synchronous>, transform_indices = @transform_2, window_bounds = array<i64: 1, 32>}, {pipeline_mode = #tpu.pipeline_mode<synchronous>, transform_indices = @transform_3, window_bounds = array<i64: 3, 32, 32>}, {pipeline_mode = #tpu.pipeline_mode<synchronous>, transform_indices = @transform_4, window_bounds = array<i64: 3, 1, 32>}, {pipeline_mode = #tpu.pipeline_mode<synchronous>, transform_indices = @transform_5, window_bounds = array<i64: 32, 8>}, {pipeline_mode = #tpu.pipeline_mode<synchronous>, transform_indices = @transform_6, window_bounds = array<i64: 1, 8>}, {transform_indices = @transform_7, window_bounds = array<i64: 128, 8>}]} {
    %c0 = arith.constant 0 : index
    %c0_0 = arith.constant 0 : index
    %0 = vector.load %arg2[%c0, %c0_0] : memref<16x32xbf16, #tpu.memory_space<vmem>>, vector<16x32xbf16>
    %c0_1 = arith.constant 0 : index
    %c0_2 = arith.constant 0 : index
    %1 = vector.load %arg3[%c0_1, %c0_2] : memref<1x32xf32, #tpu.memory_space<vmem>>, vector<1x32xf32>
    %c0_3 = arith.constant 0 : index
    %c0_4 = arith.constant 0 : index
    %2 = vector.load %arg1[%c0_3, %c0_4] : memref<128x16xbf16, #tpu.memory_space<vmem>>, vector<64x16xbf16>
    %cst = arith.constant dense<0.000000e+00> : vector<64x32xf32>
    %3 = tpu.matmul %2, %0, %cst {dimension_numbers = #tpu.dot_dimension_numbers<[1], [0], [0], [1], [0, 0, 1, 1], [], []>} : vector<64x16xbf16>, vector<16x32xbf16>, vector<64x32xf32> -> vector<64x32xf32>
    %4 = vector.broadcast %1 : vector<1x32xf32> to vector<64x32xf32>
    %5 = arith.addf %3, %4 : vector<64x32xf32>
    %cst_5 = arith.constant 0.000000e+00 : f32
    %6 = vector.broadcast %cst_5 : f32 to vector<64x32xf32>
    %7 = arith.maximumf %5, %6 : vector<64x32xf32>
    %8 = arith.truncf %7 : vector<64x32xf32> to vector<64x32xbf16>
    %c64 = arith.constant 64 : index
    %c0_6 = arith.constant 0 : index
    %9 = vector.load %arg1[%c64, %c0_6] : memref<128x16xbf16, #tpu.memory_space<vmem>>, vector<64x16xbf16>
    %cst_7 = arith.constant dense<0.000000e+00> : vector<64x32xf32>
    %10 = tpu.matmul %9, %0, %cst_7 {dimension_numbers = #tpu.dot_dimension_numbers<[1], [0], [0], [1], [0, 0, 1, 1], [], []>} : vector<64x16xbf16>, vector<16x32xbf16>, vector<64x32xf32> -> vector<64x32xf32>
    %11 = vector.broadcast %1 : vector<1x32xf32> to vector<64x32xf32>
    %12 = arith.addf %10, %11 : vector<64x32xf32>
    %cst_8 = arith.constant 0.000000e+00 : f32
    %13 = vector.broadcast %cst_8 : f32 to vector<64x32xf32>
    %14 = arith.maximumf %12, %13 : vector<64x32xf32>
    %15 = arith.truncf %14 : vector<64x32xf32> to vector<64x32xbf16>
    %c0_9 = arith.constant 0 : index
    %c0_10 = arith.constant 0 : index
    %c0_11 = arith.constant 0 : index
    %16 = vector.load %arg4[%c0_9, %c0_10, %c0_11] : memref<3x32x32xbf16, #tpu.memory_space<vmem>>, vector<1x32x32xbf16>
    %17 = vector.shape_cast %16 : vector<1x32x32xbf16> to vector<32x32xbf16>
    %c0_12 = arith.constant 0 : index
    %c0_13 = arith.constant 0 : index
    %c0_14 = arith.constant 0 : index
    %18 = vector.load %arg5[%c0_12, %c0_13, %c0_14] : memref<3x1x32xf32, #tpu.memory_space<vmem>>, vector<1x1x32xf32>
    %19 = vector.shape_cast %18 : vector<1x1x32xf32> to vector<1x32xf32>
    %cst_15 = arith.constant dense<0.000000e+00> : vector<64x32xf32>
    %20 = tpu.matmul %8, %17, %cst_15 {dimension_numbers = #tpu.dot_dimension_numbers<[1], [0], [0], [1], [0, 0, 1, 1], [], []>} : vector<64x32xbf16>, vector<32x32xbf16>, vector<64x32xf32> -> vector<64x32xf32>
    %21 = vector.broadcast %19 : vector<1x32xf32> to vector<64x32xf32>
    %22 = arith.addf %20, %21 : vector<64x32xf32>
    %cst_16 = arith.constant 0.000000e+00 : f32
    %23 = vector.broadcast %cst_16 : f32 to vector<64x32xf32>
    %24 = arith.maximumf %22, %23 : vector<64x32xf32>
    %25 = arith.truncf %24 : vector<64x32xf32> to vector<64x32xbf16>
    %cst_17 = arith.constant dense<0.000000e+00> : vector<64x32xf32>
    %26 = tpu.matmul %15, %17, %cst_17 {dimension_numbers = #tpu.dot_dimension_numbers<[1], [0], [0], [1], [0, 0, 1, 1], [], []>} : vector<64x32xbf16>, vector<32x32xbf16>, vector<64x32xf32> -> vector<64x32xf32>
    %27 = vector.broadcast %19 : vector<1x32xf32> to vector<64x32xf32>
    %28 = arith.addf %26, %27 : vector<64x32xf32>
    %cst_18 = arith.constant 0.000000e+00 : f32
    %29 = vector.broadcast %cst_18 : f32 to vector<64x32xf32>
    %30 = arith.maximumf %28, %29 : vector<64x32xf32>
    %31 = arith.truncf %30 : vector<64x32xf32> to vector<64x32xbf16>
    %c1 = arith.constant 1 : index
    %c0_19 = arith.constant 0 : index
    %c0_20 = arith.constant 0 : index
    %32 = vector.load %arg4[%c1, %c0_19, %c0_20] : memref<3x32x32xbf16, #tpu.memory_space<vmem>>, vector<1x32x32xbf16>
    %33 = vector.shape_cast %32 : vector<1x32x32xbf16> to vector<32x32xbf16>
    %c1_21 = arith.constant 1 : index
    %c0_22 = arith.constant 0 : index
    %c0_23 = arith.constant 0 : index
    %34 = vector.load %arg5[%c1_21, %c0_22, %c0_23] : memref<3x1x32xf32, #tpu.memory_space<vmem>>, vector<1x1x32xf32>
    %35 = vector.shape_cast %34 : vector<1x1x32xf32> to vector<1x32xf32>
    %cst_24 = arith.constant dense<0.000000e+00> : vector<64x32xf32>
    %36 = tpu.matmul %25, %33, %cst_24 {dimension_numbers = #tpu.dot_dimension_numbers<[1], [0], [0], [1], [0, 0, 1, 1], [], []>} : vector<64x32xbf16>, vector<32x32xbf16>, vector<64x32xf32> -> vector<64x32xf32>
    %37 = vector.broadcast %35 : vector<1x32xf32> to vector<64x32xf32>
    %38 = arith.addf %36, %37 : vector<64x32xf32>
    %cst_25 = arith.constant 0.000000e+00 : f32
    %39 = vector.broadcast %cst_25 : f32 to vector<64x32xf32>
    %40 = arith.maximumf %38, %39 : vector<64x32xf32>
    %41 = arith.truncf %40 : vector<64x32xf32> to vector<64x32xbf16>
    %cst_26 = arith.constant dense<0.000000e+00> : vector<64x32xf32>
    %42 = tpu.matmul %31, %33, %cst_26 {dimension_numbers = #tpu.dot_dimension_numbers<[1], [0], [0], [1], [0, 0, 1, 1], [], []>} : vector<64x32xbf16>, vector<32x32xbf16>, vector<64x32xf32> -> vector<64x32xf32>
    %43 = vector.broadcast %35 : vector<1x32xf32> to vector<64x32xf32>
    %44 = arith.addf %42, %43 : vector<64x32xf32>
    %cst_27 = arith.constant 0.000000e+00 : f32
    %45 = vector.broadcast %cst_27 : f32 to vector<64x32xf32>
    %46 = arith.maximumf %44, %45 : vector<64x32xf32>
    %47 = arith.truncf %46 : vector<64x32xf32> to vector<64x32xbf16>
    %c2 = arith.constant 2 : index
    %c0_28 = arith.constant 0 : index
    %c0_29 = arith.constant 0 : index
    %48 = vector.load %arg4[%c2, %c0_28, %c0_29] : memref<3x32x32xbf16, #tpu.memory_space<vmem>>, vector<1x32x32xbf16>
    %49 = vector.shape_cast %48 : vector<1x32x32xbf16> to vector<32x32xbf16>
    %c2_30 = arith.constant 2 : index
    %c0_31 = arith.constant 0 : index
    %c0_32 = arith.constant 0 : index
    %50 = vector.load %arg5[%c2_30, %c0_31, %c0_32] : memref<3x1x32xf32, #tpu.memory_space<vmem>>, vector<1x1x32xf32>
    %51 = vector.shape_cast %50 : vector<1x1x32xf32> to vector<1x32xf32>
    %cst_33 = arith.constant dense<0.000000e+00> : vector<64x32xf32>
    %52 = tpu.matmul %41, %49, %cst_33 {dimension_numbers = #tpu.dot_dimension_numbers<[1], [0], [0], [1], [0, 0, 1, 1], [], []>} : vector<64x32xbf16>, vector<32x32xbf16>, vector<64x32xf32> -> vector<64x32xf32>
    %53 = vector.broadcast %51 : vector<1x32xf32> to vector<64x32xf32>
    %54 = arith.addf %52, %53 : vector<64x32xf32>
    %cst_34 = arith.constant 0.000000e+00 : f32
    %55 = vector.broadcast %cst_34 : f32 to vector<64x32xf32>
    %56 = arith.maximumf %54, %55 : vector<64x32xf32>
    %57 = arith.truncf %56 : vector<64x32xf32> to vector<64x32xbf16>
    %cst_35 = arith.constant dense<0.000000e+00> : vector<64x32xf32>
    %58 = tpu.matmul %47, %49, %cst_35 {dimension_numbers = #tpu.dot_dimension_numbers<[1], [0], [0], [1], [0, 0, 1, 1], [], []>} : vector<64x32xbf16>, vector<32x32xbf16>, vector<64x32xf32> -> vector<64x32xf32>
    %59 = vector.broadcast %51 : vector<1x32xf32> to vector<64x32xf32>
    %60 = arith.addf %58, %59 : vector<64x32xf32>
    %cst_36 = arith.constant 0.000000e+00 : f32
    %61 = vector.broadcast %cst_36 : f32 to vector<64x32xf32>
    %62 = arith.maximumf %60, %61 : vector<64x32xf32>
    %63 = arith.truncf %62 : vector<64x32xf32> to vector<64x32xbf16>
    %c0_37 = arith.constant 0 : index
    %c0_38 = arith.constant 0 : index
    %64 = vector.load %arg6[%c0_37, %c0_38] : memref<32x8xbf16, #tpu.memory_space<vmem>>, vector<32x8xbf16>
    %c0_39 = arith.constant 0 : index
    %c0_40 = arith.constant 0 : index
    %65 = vector.load %arg7[%c0_39, %c0_40] : memref<1x8xf32, #tpu.memory_space<vmem>>, vector<1x8xf32>
    %cst_41 = arith.constant dense<0.000000e+00> : vector<64x8xf32>
    %66 = tpu.matmul %57, %64, %cst_41 {dimension_numbers = #tpu.dot_dimension_numbers<[1], [0], [0], [1], [0, 0, 1, 1], [], []>} : vector<64x32xbf16>, vector<32x8xbf16>, vector<64x8xf32> -> vector<64x8xf32>
    %67 = vector.broadcast %65 : vector<1x8xf32> to vector<64x8xf32>
    %68 = arith.addf %66, %67 : vector<64x8xf32>
    %cst_42 = arith.constant dense<0.000000e+00> : vector<64x8xf32>
    %69 = tpu.matmul %63, %64, %cst_42 {dimension_numbers = #tpu.dot_dimension_numbers<[1], [0], [0], [1], [0, 0, 1, 1], [], []>} : vector<64x32xbf16>, vector<32x8xbf16>, vector<64x8xf32> -> vector<64x8xf32>
    %70 = vector.broadcast %65 : vector<1x8xf32> to vector<64x8xf32>
    %71 = arith.addf %69, %70 : vector<64x8xf32>
    %c0_43 = arith.constant 0 : index
    %c0_44 = arith.constant 0 : index
    %72 = vector.load %arg8[%c0_43, %c0_44] : memref<128x8xf32, #tpu.memory_space<vmem>>, vector<64x8xf32>
    tpu.vector_store %arg8[%c0_43, %c0_44], %68 {strides = array<i32>} : memref<128x8xf32, #tpu.memory_space<vmem>>, vector<64x8xf32>,
    %c64_45 = arith.constant 64 : index
    %c0_46 = arith.constant 0 : index
    %73 = vector.load %arg8[%c64_45, %c0_46] : memref<128x8xf32, #tpu.memory_space<vmem>>, vector<64x8xf32>
    tpu.vector_store %arg8[%c64_45, %c0_46], %71 {strides = array<i32>} : memref<128x8xf32, #tpu.memory_space<vmem>>, vector<64x8xf32>,
    return
  }
  func.func @transform_0(%arg0: i32) -> (i32, i32) {
    %c0_i32 = arith.constant 0 : i32
    %c0_i32_0 = arith.constant 0 : i32
    return %arg0, %c0_i32 : i32, i32
  }
  func.func @transform_1(%arg0: i32) -> (i32, i32) {
    %c0_i32 = arith.constant 0 : i32
    %c0_i32_0 = arith.constant 0 : i32
    %c0_i32_1 = arith.constant 0 : i32
    return %c0_i32, %c0_i32_0 : i32, i32
  }
  func.func @transform_2(%arg0: i32) -> (i32, i32) {
    %c0_i32 = arith.constant 0 : i32
    %c0_i32_0 = arith.constant 0 : i32
    %c0_i32_1 = arith.constant 0 : i32
    return %c0_i32, %c0_i32_0 : i32, i32
  }
  func.func @transform_3(%arg0: i32) -> (i32, i32, i32) {
    %c0_i32 = arith.constant 0 : i32
    %c0_i32_0 = arith.constant 0 : i32
    %c0_i32_1 = arith.constant 0 : i32
    %c0_i32_2 = arith.constant 0 : i32
    return %c0_i32, %c0_i32_0, %c0_i32_1 : i32, i32, i32
  }
  func.func @transform_4(%arg0: i32) -> (i32, i32, i32) {
    %c0_i32 = arith.constant 0 : i32
    %c0_i32_0 = arith.constant 0 : i32
    %c0_i32_1 = arith.constant 0 : i32
    %c0_i32_2 = arith.constant 0 : i32
    return %c0_i32, %c0_i32_0, %c0_i32_1 : i32, i32, i32
  }
  func.func @transform_5(%arg0: i32) -> (i32, i32) {
    %c0_i32 = arith.constant 0 : i32
    %c0_i32_0 = arith.constant 0 : i32
    %c0_i32_1 = arith.constant 0 : i32
    return %c0_i32, %c0_i32_0 : i32, i32
  }
  func.func @transform_6(%arg0: i32) -> (i32, i32) {
    %c0_i32 = arith.constant 0 : i32
    %c0_i32_0 = arith.constant 0 : i32
    %c0_i32_1 = arith.constant 0 : i32
    return %c0_i32, %c0_i32_0 : i32, i32
  }
  func.func @transform_7(%arg0: i32) -> (i32, i32) {
    %c0_i32 = arith.constant 0 : i32
    %c0_i32_0 = arith.constant 0 : i32
    return %arg0, %c0_i32 : i32, i32
  }
}

</mosaic_0001>

<llo_original>
// kernel: tpu_custom_call.1
$region0: #{tpu_custom_call.1}
  #allocation0 [shape = 'u32[]', space=smem, size = 0x4, offset = 0x4, fixed_abs, tag = 'smem constant byte address 0x4 - core index']
  #allocation1 [shape = 'u32[144,128]{1,0:T(1,128)}', space=vmem, size = 0x12000, scoped, tag = 'internal scratch']
  %s0 = inlined_call_operand.vmem [shape: bf16[128,16], index: 0, kind: input, shape index: {}]
  %s1 = inlined_call_operand.vmem [shape: bf16[16,32], index: 1, kind: input, shape index: {}]
  %s2 = inlined_call_operand.vmem [shape: f32[1,32], index: 2, kind: input, shape index: {}]
  %s3 = inlined_call_operand.vmem [shape: bf16[3,32,32], index: 3, kind: input, shape index: {}]
  %s4 = inlined_call_operand.vmem [shape: f32[3,1,32], index: 4, kind: input, shape index: {}]
  %s5 = inlined_call_operand.vmem [shape: bf16[32,8], index: 5, kind: input, shape index: {}]
  %s6 = inlined_call_operand.vmem [shape: f32[1,8], index: 6, kind: input, shape index: {}]
  %s7 = inlined_call_operand.vmem [shape: f32[128,8], index: 7, kind: output, shape index: {}]
  %s8 = sld [smem:[#allocation0]]
  $region38: #{tpu_custom_call.1} parent=0
    _
  %s10 = ssub.s32 1, %s8
  %s11 = scalar_select 0, %s10, %s8
  // Predicated region
  $region2: #{tpu_custom_call.1} parent=0 // pred_check
    _
  $region3: #{tpu_custom_call.1} parent=0 // pred_check_branch
    %13 = sbr.rel (0) target = $region5
  $region4: #{tpu_custom_call.1} parent=0 // pred_region
    _
  $region5: #{tpu_custom_call.1} parent=0 // pred_fallthru
    _
  // Predicated region
  $region6: #{tpu_custom_call.1} parent=0 // pred_check
    _
  $region7: #{tpu_custom_call.1} parent=0 // pred_check_branch
    %15 = sbr.rel (0) target = $region9
  $region8: #{tpu_custom_call.1} parent=0 // pred_region
    _
  $region9: #{tpu_custom_call.1} parent=0 // pred_fallthru
    _
  // Predicated region
  $region10: #{tpu_custom_call.1} parent=0 // pred_check
    _
  $region11: #{tpu_custom_call.1} parent=0 // pred_check_branch
    %17 = sbr.rel (0) target = $region13
  $region12: #{tpu_custom_call.1} parent=0 // pred_region
    _
  $region13: #{tpu_custom_call.1} parent=0 // pred_fallthru
    _
  // Predicated region
  $region14: #{tpu_custom_call.1} parent=0 // pred_check
    _
  $region15: #{tpu_custom_call.1} parent=0 // pred_check_branch
    %19 = sbr.rel (0) target = $region17
  $region16: #{tpu_custom_call.1} parent=0 // pred_region
    _
  $region17: #{tpu_custom_call.1} parent=0 // pred_fallthru
    _
  // Predicated region
  $region18: #{tpu_custom_call.1} parent=0 // pred_check
    _
  $region19: #{tpu_custom_call.1} parent=0 // pred_check_branch
    %21 = sbr.rel (0) target = $region21
  $region20: #{tpu_custom_call.1} parent=0 // pred_region
    _
  $region21: #{tpu_custom_call.1} parent=0 // pred_fallthru
    _
  // Predicated region
  $region22: #{tpu_custom_call.1} parent=0 // pred_check
    _
  $region23: #{tpu_custom_call.1} parent=0 // pred_check_branch
    %23 = sbr.rel (0) target = $region25
  $region24: #{tpu_custom_call.1} parent=0 // pred_region
    _
  $region25: #{tpu_custom_call.1} parent=0 // pred_fallthru
    _
  // Predicated region
  $region26: #{tpu_custom_call.1} parent=0 // pred_check
    _
  $region27: #{tpu_custom_call.1} parent=0 // pred_check_branch
    %25 = sbr.rel (0) target = $region29
  $region28: #{tpu_custom_call.1} parent=0 // pred_region
    _
  $region29: #{tpu_custom_call.1} parent=0 // pred_fallthru
    _
  %v27 = vld [vmem:[%s1] sm:$0xf]
  %v28 = vld [vmem:[%s1 + $0x4] sm:$0xf]
  %v29 = vld [vmem:[%s2] sm:$0x1]
  %v30 = vld [vmem:[%s0] sm:$0xf]
  %v31 = vld [vmem:[%s0 + $0x4] sm:$0xf]
  %v32 = vld [vmem:[%s0 + $0x8] sm:$0xf]
  %v33 = vld [vmem:[%s0 + $0xc] sm:$0xf]
  %v34 = vld [vmem:[%s0 + $0x10] sm:$0xf]
  %v35 = vld [vmem:[%s0 + $0x14] sm:$0xf]
  %v36 = vld [vmem:[%s0 + $0x18] sm:$0xf]
  %v37 = vld [vmem:[%s0 + $0x1c] sm:$0xf]
  %v39 = vlaneseq
  %v40 = vshrl.u32 %v39, 7
  %v41 = vsub.s32 0, %v40
  %v42 = vrot.slane %v29, %v41
  %v52 = vunpack.c.l.b16 %v30
  %v53 = vunpack.c.l.b16 %v31
  %v54 = vunpack.c.l.b16 %v32
  %v55 = vunpack.c.l.b16 %v33
  %v56 = vunpack.c.l.b16 %v34
  %v57 = vunpack.c.l.b16 %v35
  %v58 = vunpack.c.l.b16 %v36
  %v59 = vunpack.c.l.b16 %v37
  %v60 = vpack.c.b16 %v53, %v52
  %v61 = vpack.c.b16 %v55, %v54
  %v62 = vpack.c.b16 %v57, %v56
  %v63 = vpack.c.b16 %v59, %v58
  %v66 = vunpack.c.l.b16 %v27
  %v67 = vunpack.c.l.b16 %v28
  %v68 = vpack.c.b16 %v67, %v66
  %vm70 = vcmask 130048
  %v72 = vsel %vm70, %v60, 0
  %v75 = vsel %vm70, %v61, 0
  %v78 = vsel %vm70, %v62, 0
  %v81 = vsel %vm70, %v63, 0
  %83 = vmatprep.subr.bf16.mxu0 0
  %84 = vmatpush1.bf16.msra.mxu0 %v68
  %85 = vmatprep.subr.bf16.mxu0 0
  %86 = vmatpush1.bf16.msra.mxu0 0
  %87 = vmatprep.subr.bf16.mxu0 0
  %88 = vmatpush1.bf16.msra.mxu0 0
  %89 = vmatprep.subr.bf16.mxu0 0
  %90 = vmatpush1.bf16.msra.mxu0 0
  %91 = vmatprep.subr.bf16.mxu0 0
  %92 = vmatpush1.bf16.msra.mxu0 0
  %93 = vmatprep.subr.bf16.mxu0 0
  %94 = vmatpush1.bf16.msra.mxu0 0
  %95 = vmatprep.subr.bf16.mxu0 0
  %96 = vmatpush1.bf16.msra.mxu0 0
  %97 = vmatprep.subr.bf16.mxu0 0
  %98 = vmatpush1.bf16.msra.mxu0 0
  %99 = vmatprep.subr.bf16.mxu0 0
  %100 = vmatpush1.bf16.msra.mxu0 0
  %101 = vmatprep.subr.bf16.mxu0 0
  %102 = vmatpush1.bf16.msra.mxu0 0
  %103 = vmatprep.subr.bf16.mxu0 0
  %104 = vmatpush1.bf16.msra.mxu0 0
  %105 = vmatprep.subr.bf16.mxu0 0
  %106 = vmatpush1.bf16.msra.mxu0 0
  %107 = vmatprep.subr.bf16.mxu0 0
  %108 = vmatpush1.bf16.msra.mxu0 0
  %109 = vmatprep.subr.bf16.mxu0 0
  %110 = vmatpush1.bf16.msra.mxu0 0
  %111 = vmatprep.subr.bf16.mxu0 0
  %112 = vmatpush1.bf16.msra.mxu0 0
  %113 = vmatprep.subr.bf16.mxu0 0
  %114 = vmatpush1.bf16.msra.mxu0 0
  %115 = vmatprep.mubr.bf16.mxu0 0
  %116 = vmatmul.mubr.bf16.gmra.mrb[0].mxu0 %v72
  %v117 = vpop.f32.mrb[0].mxu0
  %v118 = vadd.f32 %v42, %v117
  %v119 = vpop.f32.mrb[0].mxu0
  %v120 = vpop.f32.mrb[0].mxu0
  %v121 = vadd.f32 %v42, %v120
  %v122 = vpop.f32.mrb[0].mxu0
  %123 = vmatprep.mubr.bf16.mxu0 0
  %124 = vmatmul.mubr.bf16.gmra.mrb[0].mxu0 %v75
  %v125 = vpop.f32.mrb[0].mxu0
  %v126 = vadd.f32 %v42, %v125
  %v127 = vpop.f32.mrb[0].mxu0
  %v128 = vpop.f32.mrb[0].mxu0
  %v129 = vadd.f32 %v42, %v128
  %v130 = vpop.f32.mrb[0].mxu0
  %131 = vmatprep.mubr.bf16.mxu0 0
  %132 = vmatmul.mubr.bf16.gmra.mrb[0].mxu0 %v78
  %v133 = vpop.f32.mrb[0].mxu0
  %v134 = vadd.f32 %v42, %v133
  %v135 = vpop.f32.mrb[0].mxu0
  %v136 = vpop.f32.mrb[0].mxu0
  %v137 = vadd.f32 %v42, %v136
  %v138 = vpop.f32.mrb[0].mxu0
  %139 = vmatprep.mubr.bf16.mxu0 0
  %140 = vmatmul.mubr.bf16.gmra.mrb[0].mxu0 %v81
  %v141 = vpop.f32.mrb[0].mxu0
  %v142 = vadd.f32 %v42, %v141
  %v143 = vpop.f32.mrb[0].mxu0
  %v144 = vpop.f32.mrb[0].mxu0
  %v145 = vadd.f32 %v42, %v144
  %v146 = vpop.f32.mrb[0].mxu0
  %147 = vdwg.mxu0
  %v148 = vmax.f32 %v118, 0.0
  %v149 = vmax.f32 %v121, 0.0
  %v150 = vmax.f32 %v126, 0.0
  %v151 = vmax.f32 %v129, 0.0
  %v152 = vmax.f32 %v134, 0.0
  %v153 = vmax.f32 %v137, 0.0
  %v154 = vmax.f32 %v142, 0.0
  %v155 = vmax.f32 %v145, 0.0
  %v156 = vpack.c.bf16 %v149, %v148
  %v157 = vpack.c.bf16 %v151, %v150
  %v158 = vpack.c.bf16 %v153, %v152
  %v159 = vpack.c.bf16 %v155, %v154
  %v160 = vld [vmem:[%s0 + $0x20] sm:$0xf]
  %v161 = vld [vmem:[%s0 + $0x24] sm:$0xf]
  %v162 = vld [vmem:[%s0 + $0x28] sm:$0xf]
  %v163 = vld [vmem:[%s0 + $0x2c] sm:$0xf]
  %v164 = vld [vmem:[%s0 + $0x30] sm:$0xf]
  %v165 = vld [vmem:[%s0 + $0x34] sm:$0xf]
  %v166 = vld [vmem:[%s0 + $0x38] sm:$0xf]
  %v167 = vld [vmem:[%s0 + $0x3c] sm:$0xf]
  %v176 = vunpack.c.l.b16 %v160
  %v177 = vunpack.c.l.b16 %v161
  %v178 = vunpack.c.l.b16 %v162
  %v179 = vunpack.c.l.b16 %v163
  %v180 = vunpack.c.l.b16 %v164
  %v181 = vunpack.c.l.b16 %v165
  %v182 = vunpack.c.l.b16 %v166
  %v183 = vunpack.c.l.b16 %v167
  %v184 = vpack.c.b16 %v177, %v176
  %v185 = vpack.c.b16 %v179, %v178
  %v186 = vpack.c.b16 %v181, %v180
  %v187 = vpack.c.b16 %v183, %v182
  %v189 = vsel %vm70, %v184, 0
  %v192 = vsel %vm70, %v185, 0
  %v195 = vsel %vm70, %v186, 0
  %v198 = vsel %vm70, %v187, 0
  %200 = vmatprep.subr.bf16.mxu0 0
  %201 = vmatpush1.bf16.msra.mxu0 %v68
  %202 = vmatprep.subr.bf16.mxu0 0
  %203 = vmatpush1.bf16.msra.mxu0 0
  %204 = vmatprep.subr.bf16.mxu0 0
  %205 = vmatpush1.bf16.msra.mxu0 0
  %206 = vmatprep.subr.bf16.mxu0 0
  %207 = vmatpush1.bf16.msra.mxu0 0
  %208 = vmatprep.subr.bf16.mxu0 0
  %209 = vmatpush1.bf16.msra.mxu0 0
  %210 = vmatprep.subr.bf16.mxu0 0
  %211 = vmatpush1.bf16.msra.mxu0 0
  %212 = vmatprep.subr.bf16.mxu0 0
  %213 = vmatpush1.bf16.msra.mxu0 0
  %214 = vmatprep.subr.bf16.mxu0 0
  %215 = vmatpush1.bf16.msra.mxu0 0
  %216 = vmatprep.subr.bf16.mxu0 0
  %217 = vmatpush1.bf16.msra.mxu0 0
  %218 = vmatprep.subr.bf16.mxu0 0
  %219 = vmatpush1.bf16.msra.mxu0 0
  %220 = vmatprep.subr.bf16.mxu0 0
  %221 = vmatpush1.bf16.msra.mxu0 0
  %222 = vmatprep.subr.bf16.mxu0 0
  %223 = vmatpush1.bf16.msra.mxu0 0
  %224 = vmatprep.subr.bf16.mxu0 0
  %225 = vmatpush1.bf16.msra.mxu0 0
  %226 = vmatprep.subr.bf16.mxu0 0
  %227 = vmatpush1.bf16.msra.mxu0 0
  %228 = vmatprep.subr.bf16.mxu0 0
  %229 = vmatpush1.bf16.msra.mxu0 0
  %230 = vmatprep.subr.bf16.mxu0 0
  %231 = vmatpush1.bf16.msra.mxu0 0
  %232 = vmatprep.mubr.bf16.mxu0 0
  %233 = vmatmul.mubr.bf16.gmra.mrb[0].mxu0 %v189
  %v234 = vpop.f32.mrb[0].mxu0
  %v235 = vadd.f32 %v42, %v234
  %v236 = vpop.f32.mrb[0].mxu0
  %v237 = vpop.f32.mrb[0].mxu0
  %v238 = vadd.f32 %v42, %v237
  %v239 = vpop.f32.mrb[0].mxu0
  %240 = vmatprep.mubr.bf16.mxu0 0
  %241 = vmatmul.mubr.bf16.gmra.mrb[0].mxu0 %v192
  %v242 = vpop.f32.mrb[0].mxu0
  %v243 = vadd.f32 %v42, %v242
  %v244 = vpop.f32.mrb[0].mxu0
  %v245 = vpop.f32.mrb[0].mxu0
  %v246 = vadd.f32 %v42, %v245
  %v247 = vpop.f32.mrb[0].mxu0
  %248 = vmatprep.mubr.bf16.mxu0 0
  %249 = vmatmul.mubr.bf16.gmra.mrb[0].mxu0 %v195
  %v250 = vpop.f32.mrb[0].mxu0
  %v251 = vadd.f32 %v42, %v250
  %v252 = vpop.f32.mrb[0].mxu0
  %v253 = vpop.f32.mrb[0].mxu0
  %v254 = vadd.f32 %v42, %v253
  %v255 = vpop.f32.mrb[0].mxu0
  %256 = vmatprep.mubr.bf16.mxu0 0
  %257 = vmatmul.mubr.bf16.gmra.mrb[0].mxu0 %v198
  %v258 = vpop.f32.mrb[0].mxu0
  %v259 = vadd.f32 %v42, %v258
  %v260 = vpop.f32.mrb[0].mxu0
  %v261 = vpop.f32.mrb[0].mxu0
  %v262 = vadd.f32 %v42, %v261
  %v263 = vpop.f32.mrb[0].mxu0
  %264 = vdwg.mxu0
  %v265 = vmax.f32 %v235, 0.0
  %v266 = vmax.f32 %v238, 0.0
  %v267 = vmax.f32 %v243, 0.0
  %v268 = vmax.f32 %v246, 0.0
  %v269 = vmax.f32 %v251, 0.0
  %v270 = vmax.f32 %v254, 0.0
  %v271 = vmax.f32 %v259, 0.0
  %v272 = vmax.f32 %v262, 0.0
  %v273 = vpack.c.bf16 %v266, %v265
  %v274 = vpack.c.bf16 %v268, %v267
  %v275 = vpack.c.bf16 %v270, %v269
  %v276 = vpack.c.bf16 %v272, %v271
  %v277 = vld [vmem:[%s3] sm:$0xf]
  %v278 = vld [vmem:[%s3 + $0x4] sm:$0xf]
  %v279 = vld [vmem:[%s3 + $0x8] sm:$0xf]
  %v280 = vld [vmem:[%s3 + $0xc] sm:$0xf]
  %v281 = vld [vmem:[%s4] sm:$0x1]
  %v283 = vlaneseq
  %v284 = vshrl.u32 %v283, 7
  %v285 = vsub.s32 0, %v284
  %v286 = vrot.slane %v281, %v285
  %v292 = vunpack.c.l.b16 %v277
  %v293 = vunpack.c.l.b16 %v278
  %v294 = vunpack.c.l.b16 %v279
  %v295 = vunpack.c.l.b16 %v280
  %v296 = vpack.c.b16 %v293, %v292
  %v297 = vpack.c.b16 %v295, %v294
  %vm300 = vcmask 261120
  %v302 = vsel %vm300, %v156, 0
  %v305 = vsel %vm300, %v157, 0
  %v308 = vsel %vm300, %v158, 0
  %v311 = vsel %vm300, %v159, 0
  %313 = vmatprep.subr.bf16.mxu0 0
  %314 = vmatpush1.bf16.msra.mxu0 %v296
  %315 = vmatprep.subr.bf16.mxu0 0
  %316 = vmatpush1.bf16.msra.mxu0 %v297
  %317 = vmatprep.subr.bf16.mxu0 0
  %318 = vmatpush1.bf16.msra.mxu0 0
  %319 = vmatprep.subr.bf16.mxu0 0
  %320 = vmatpush1.bf16.msra.mxu0 0
  %321 = vmatprep.subr.bf16.mxu0 0
  %322 = vmatpush1.bf16.msra.mxu0 0
  %323 = vmatprep.subr.bf16.mxu0 0
  %324 = vmatpush1.bf16.msra.mxu0 0
  %325 = vmatprep.subr.bf16.mxu0 0
  %326 = vmatpush1.bf16.msra.mxu0 0
  %327 = vmatprep.subr.bf16.mxu0 0
  %328 = vmatpush1.bf16.msra.mxu0 0
  %329 = vmatprep.subr.bf16.mxu0 0
  %330 = vmatpush1.bf16.msra.mxu0 0
  %331 = vmatprep.subr.bf16.mxu0 0
  %332 = vmatpush1.bf16.msra.mxu0 0
  %333 = vmatprep.subr.bf16.mxu0 0
  %334 = vmatpush1.bf16.msra.mxu0 0
  %335 = vmatprep.subr.bf16.mxu0 0
  %336 = vmatpush1.bf16.msra.mxu0 0
  %337 = vmatprep.subr.bf16.mxu0 0
  %338 = vmatpush1.bf16.msra.mxu0 0
  %339 = vmatprep.subr.bf16.mxu0 0
  %340 = vmatpush1.bf16.msra.mxu0 0
  %341 = vmatprep.subr.bf16.mxu0 0
  %342 = vmatpush1.bf16.msra.mxu0 0
  %343 = vmatprep.subr.bf16.mxu0 0
  %344 = vmatpush1.bf16.msra.mxu0 0
  %345 = vmatprep.mubr.bf16.mxu0 0
  %346 = vmatmul.mubr.bf16.gmra.mrb[0].mxu0 %v302
  %v347 = vpop.f32.mrb[0].mxu0
  %v348 = vadd.f32 %v286, %v347
  %v349 = vpop.f32.mrb[0].mxu0
  %v350 = vpop.f32.mrb[0].mxu0
  %v351 = vadd.f32 %v286, %v350
  %v352 = vpop.f32.mrb[0].mxu0
  %353 = vmatprep.mubr.bf16.mxu0 0
  %354 = vmatmul.mubr.bf16.gmra.mrb[0].mxu0 %v305
  %v355 = vpop.f32.mrb[0].mxu0
  %v356 = vadd.f32 %v286, %v355
  %v357 = vpop.f32.mrb[0].mxu0
  %v358 = vpop.f32.mrb[0].mxu0
  %v359 = vadd.f32 %v286, %v358
  %v360 = vpop.f32.mrb[0].mxu0
  %361 = vmatprep.mubr.bf16.mxu0 0
  %362 = vmatmul.mubr.bf16.gmra.mrb[0].mxu0 %v308
  %v363 = vpop.f32.mrb[0].mxu0
  %v364 = vadd.f32 %v286, %v363
  %v365 = vpop.f32.mrb[0].mxu0
  %v366 = vpop.f32.mrb[0].mxu0
  %v367 = vadd.f32 %v286, %v366
  %v368 = vpop.f32.mrb[0].mxu0
  %369 = vmatprep.mubr.bf16.mxu0 0
  %370 = vmatmul.mubr.bf16.gmra.mrb[0].mxu0 %v311
  %v371 = vpop.f32.mrb[0].mxu0
  %v372 = vadd.f32 %v286, %v371
  %v373 = vpop.f32.mrb[0].mxu0
  %v374 = vpop.f32.mrb[0].mxu0
  %v375 = vadd.f32 %v286, %v374
  %v376 = vpop.f32.mrb[0].mxu0
  %377 = vdwg.mxu0
  %v378 = vmax.f32 %v348, 0.0
  %v379 = vmax.f32 %v351, 0.0
  %v380 = vmax.f32 %v356, 0.0
  %v381 = vmax.f32 %v359, 0.0
  %v382 = vmax.f32 %v364, 0.0
  %v383 = vmax.f32 %v367, 0.0
  %v384 = vmax.f32 %v372, 0.0
  %v385 = vmax.f32 %v375, 0.0
  %v386 = vpack.c.bf16 %v379, %v378
  %v387 = vpack.c.bf16 %v381, %v380
  %v388 = vpack.c.bf16 %v383, %v382
  %v389 = vpack.c.bf16 %v385, %v384
  %v391 = vsel %vm300, %v273, 0
  %v394 = vsel %vm300, %v274, 0
  %v397 = vsel %vm300, %v275, 0
  %v400 = vsel %vm300, %v276, 0
  %402 = vmatprep.subr.bf16.mxu0 0
  %403 = vmatpush1.bf16.msra.mxu0 %v296
  %404 = vmatprep.subr.bf16.mxu0 0
  %405 = vmatpush1.bf16.msra.mxu0 %v297
  %406 = vmatprep.subr.bf16.mxu0 0
  %407 = vmatpush1.bf16.msra.mxu0 0
  %408 = vmatprep.subr.bf16.mxu0 0
  %409 = vmatpush1.bf16.msra.mxu0 0
  %410 = vmatprep.subr.bf16.mxu0 0
  %411 = vmatpush1.bf16.msra.mxu0 0
  %412 = vmatprep.subr.bf16.mxu0 0
  %413 = vmatpush1.bf16.msra.mxu0 0
  %414 = vmatprep.subr.bf16.mxu0 0
  %415 = vmatpush1.bf16.msra.mxu0 0
  %416 = vmatprep.subr.bf16.mxu0 0
  %417 = vmatpush1.bf16.msra.mxu0 0
  %418 = vmatprep.subr.bf16.mxu0 0
  %419 = vmatpush1.bf16.msra.mxu0 0
  %420 = vmatprep.subr.bf16.mxu0 0
  %421 = vmatpush1.bf16.msra.mxu0 0
  %422 = vmatprep.subr.bf16.mxu0 0
  %423 = vmatpush1.bf16.msra.mxu0 0
  %424 = vmatprep.subr.bf16.mxu0 0
  %425 = vmatpush1.bf16.msra.mxu0 0
  %426 = vmatprep.subr.bf16.mxu0 0
  %427 = vmatpush1.bf16.msra.mxu0 0
  %428 = vmatprep.subr.bf16.mxu0 0
  %429 = vmatpush1.bf16.msra.mxu0 0
  %430 = vmatprep.subr.bf16.mxu0 0
  %431 = vmatpush1.bf16.msra.mxu0 0
  %432 = vmatprep.subr.bf16.mxu0 0
  %433 = vmatpush1.bf16.msra.mxu0 0
  %434 = vmatprep.mubr.bf16.mxu0 0
  %435 = vmatmul.mubr.bf16.gmra.mrb[0].mxu0 %v391
  %v436 = vpop.f32.mrb[0].mxu0
  %v437 = vadd.f32 %v286, %v436
  %v438 = vpop.f32.mrb[0].mxu0
  %v439 = vpop.f32.mrb[0].mxu0
  %v440 = vadd.f32 %v286, %v439
  %v441 = vpop.f32.mrb[0].mxu0
  %442 = vmatprep.mubr.bf16.mxu0 0
  %443 = vmatmul.mubr.bf16.gmra.mrb[0].mxu0 %v394
  %v444 = vpop.f32.mrb[0].mxu0
  %v445 = vadd.f32 %v286, %v444
  %v446 = vpop.f32.mrb[0].mxu0
  %v447 = vpop.f32.mrb[0].mxu0
  %v448 = vadd.f32 %v286, %v447
  %v449 = vpop.f32.mrb[0].mxu0
  %450 = vmatprep.mubr.bf16.mxu0 0
  %451 = vmatmul.mubr.bf16.gmra.mrb[0].mxu0 %v397
  %v452 = vpop.f32.mrb[0].mxu0
  %v453 = vadd.f32 %v286, %v452
  %v454 = vpop.f32.mrb[0].mxu0
  %v455 = vpop.f32.mrb[0].mxu0
  %v456 = vadd.f32 %v286, %v455
  %v457 = vpop.f32.mrb[0].mxu0
  %458 = vmatprep.mubr.bf16.mxu0 0
  %459 = vmatmul.mubr.bf16.gmra.mrb[0].mxu0 %v400
  %v460 = vpop.f32.mrb[0].mxu0
  %v461 = vadd.f32 %v286, %v460
  %v462 = vpop.f32.mrb[0].mxu0
  %v463 = vpop.f32.mrb[0].mxu0
  %v464 = vadd.f32 %v286, %v463
  %v465 = vpop.f32.mrb[0].mxu0
  %466 = vdwg.mxu0
  %v467 = vmax.f32 %v437, 0.0
  %v468 = vmax.f32 %v440, 0.0
  %v469 = vmax.f32 %v445, 0.0
  %v470 = vmax.f32 %v448, 0.0
  %v471 = vmax.f32 %v453, 0.0
  %v472 = vmax.f32 %v456, 0.0
  %v473 = vmax.f32 %v461, 0.0
  %v474 = vmax.f32 %v464, 0.0
  %v475 = vpack.c.bf16 %v468, %v467
  %v476 = vpack.c.bf16 %v470, %v469
  %v477 = vpack.c.bf16 %v472, %v471
  %v478 = vpack.c.bf16 %v474, %v473
  %s479 = scalar_lea.vmem %s3, 16
  %v480 = vld [vmem:[%s479] sm:$0xf]
  %v481 = vld [vmem:[%s479 + $0x4] sm:$0xf]
  %v482 = vld [vmem:[%s479 + $0x8] sm:$0xf]
  %v483 = vld [vmem:[%s479 + $0xc] sm:$0xf]
  %s484 = scalar_lea.vmem %s4, 1
  %v485 = vld [vmem:[%s484] sm:$0x1]
  %v487 = vlaneseq
  %v488 = vshrl.u32 %v487, 7
  %v489 = vsub.s32 0, %v488
  %v490 = vrot.slane %v485, %v489
  %v496 = vunpack.c.l.b16 %v480
  %v497 = vunpack.c.l.b16 %v481
  %v498 = vunpack.c.l.b16 %v482
  %v499 = vunpack.c.l.b16 %v483
  %v500 = vpack.c.b16 %v497, %v496
  %v501 = vpack.c.b16 %v499, %v498
  %v505 = vsel %vm300, %v386, 0
  %v508 = vsel %vm300, %v387, 0
  %v511 = vsel %vm300, %v388, 0
  %v514 = vsel %vm300, %v389, 0
  %516 = vmatprep.subr.bf16.mxu0 0
  %517 = vmatpush1.bf16.msra.mxu0 %v500
  %518 = vmatprep.subr.bf16.mxu0 0
  %519 = vmatpush1.bf16.msra.mxu0 %v501
  %520 = vmatprep.subr.bf16.mxu0 0
  %521 = vmatpush1.bf16.msra.mxu0 0
  %522 = vmatprep.subr.bf16.mxu0 0
  %523 = vmatpush1.bf16.msra.mxu0 0
  %524 = vmatprep.subr.bf16.mxu0 0
  %525 = vmatpush1.bf16.msra.mxu0 0
  %526 = vmatprep.subr.bf16.mxu0 0
  %527 = vmatpush1.bf16.msra.mxu0 0
  %528 = vmatprep.subr.bf16.mxu0 0
  %529 = vmatpush1.bf16.msra.mxu0 0
  %530 = vmatprep.subr.bf16.mxu0 0
  %531 = vmatpush1.bf16.msra.mxu0 0
  %532 = vmatprep.subr.bf16.mxu0 0
  %533 = vmatpush1.bf16.msra.mxu0 0
  %534 = vmatprep.subr.bf16.mxu0 0
  %535 = vmatpush1.bf16.msra.mxu0 0
  %536 = vmatprep.subr.bf16.mxu0 0
  %537 = vmatpush1.bf16.msra.mxu0 0
  %538 = vmatprep.subr.bf16.mxu0 0
  %539 = vmatpush1.bf16.msra.mxu0 0
  %540 = vmatprep.subr.bf16.mxu0 0
  %541 = vmatpush1.bf16.msra.mxu0 0
  %542 = vmatprep.subr.bf16.mxu0 0
  %543 = vmatpush1.bf16.msra.mxu0 0
  %544 = vmatprep.subr.bf16.mxu0 0
  %545 = vmatpush1.bf16.msra.mxu0 0
  %546 = vmatprep.subr.bf16.mxu0 0
  %547 = vmatpush1.bf16.msra.mxu0 0
  %548 = vmatprep.mubr.bf16.mxu0 0
  %549 = vmatmul.mubr.bf16.gmra.mrb[0].mxu0 %v505
  %v550 = vpop.f32.mrb[0].mxu0
  %v551 = vadd.f32 %v490, %v550
  %v552 = vpop.f32.mrb[0].mxu0
  %v553 = vpop.f32.mrb[0].mxu0
  %v554 = vadd.f32 %v490, %v553
  %v555 = vpop.f32.mrb[0].mxu0
  %556 = vmatprep.mubr.bf16.mxu0 0
  %557 = vmatmul.mubr.bf16.gmra.mrb[0].mxu0 %v508
  %v558 = vpop.f32.mrb[0].mxu0
  %v559 = vadd.f32 %v490, %v558
  %v560 = vpop.f32.mrb[0].mxu0
  %v561 = vpop.f32.mrb[0].mxu0
  %v562 = vadd.f32 %v490, %v561
  %v563 = vpop.f32.mrb[0].mxu0
  %564 = vmatprep.mubr.bf16.mxu0 0
  %565 = vmatmul.mubr.bf16.gmra.mrb[0].mxu0 %v511
  %v566 = vpop.f32.mrb[0].mxu0
  %v567 = vadd.f32 %v490, %v566
  %v568 = vpop.f32.mrb[0].mxu0
  %v569 = vpop.f32.mrb[0].mxu0
  %v570 = vadd.f32 %v490, %v569
  %v571 = vpop.f32.mrb[0].mxu0
  %572 = vmatprep.mubr.bf16.mxu0 0
  %573 = vmatmul.mubr.bf16.gmra.mrb[0].mxu0 %v514
  %v574 = vpop.f32.mrb[0].mxu0
  %v575 = vadd.f32 %v490, %v574
  %v576 = vpop.f32.mrb[0].mxu0
  %v577 = vpop.f32.mrb[0].mxu0
  %v578 = vadd.f32 %v490, %v577
  %v579 = vpop.f32.mrb[0].mxu0
  %580 = vdwg.mxu0
  %v581 = vmax.f32 %v551, 0.0
  %v582 = vmax.f32 %v554, 0.0
  %v583 = vmax.f32 %v559, 0.0
  %v584 = vmax.f32 %v562, 0.0
  %v585 = vmax.f32 %v567, 0.0
  %v586 = vmax.f32 %v570, 0.0
  %v587 = vmax.f32 %v575, 0.0
  %v588 = vmax.f32 %v578, 0.0
  %v589 = vpack.c.bf16 %v582, %v581
  %v590 = vpack.c.bf16 %v584, %v583
  %v591 = vpack.c.bf16 %v586, %v585
  %v592 = vpack.c.bf16 %v588, %v587
  %v594 = vsel %vm300, %v475, 0
  %v597 = vsel %vm300, %v476, 0
  %v600 = vsel %vm300, %v477, 0
  %v603 = vsel %vm300, %v478, 0
  %605 = vmatprep.subr.bf16.mxu0 0
  %606 = vmatpush1.bf16.msra.mxu0 %v500
  %607 = vmatprep.subr.bf16.mxu0 0
  %608 = vmatpush1.bf16.msra.mxu0 %v501
  %609 = vmatprep.subr.bf16.mxu0 0
  %610 = vmatpush1.bf16.msra.mxu0 0
  %611 = vmatprep.subr.bf16.mxu0 0
  %612 = vmatpush1.bf16.msra.mxu0 0
  %613 = vmatprep.subr.bf16.mxu0 0
  %614 = vmatpush1.bf16.msra.mxu0 0
  %615 = vmatprep.subr.bf16.mxu0 0
  %616 = vmatpush1.bf16.msra.mxu0 0
  %617 = vmatprep.subr.bf16.mxu0 0
  %618 = vmatpush1.bf16.msra.mxu0 0
  %619 = vmatprep.subr.bf16.mxu0 0
  %620 = vmatpush1.bf16.msra.mxu0 0
  %621 = vmatprep.subr.bf16.mxu0 0
  %622 = vmatpush1.bf16.msra.mxu0 0
  %623 = vmatprep.subr.bf16.mxu0 0
  %624 = vmatpush1.bf16.msra.mxu0 0
  %625 = vmatprep.subr.bf16.mxu0 0
  %626 = vmatpush1.bf16.msra.mxu0 0
  %627 = vmatprep.subr.bf16.mxu0 0
  %628 = vmatpush1.bf16.msra.mxu0 0
  %629 = vmatprep.subr.bf16.mxu0 0
  %630 = vmatpush1.bf16.msra.mxu0 0
  %631 = vmatprep.subr.bf16.mxu0 0
  %632 = vmatpush1.bf16.msra.mxu0 0
  %633 = vmatprep.subr.bf16.mxu0 0
  %634 = vmatpush1.bf16.msra.mxu0 0
  %635 = vmatprep.subr.bf16.mxu0 0
  %636 = vmatpush1.bf16.msra.mxu0 0
  %637 = vmatprep.mubr.bf16.mxu0 0
  %638 = vmatmul.mubr.bf16.gmra.mrb[0].mxu0 %v594
  %v639 = vpop.f32.mrb[0].mxu0
  %v640 = vadd.f32 %v490, %v639
  %v641 = vpop.f32.mrb[0].mxu0
  %v642 = vpop.f32.mrb[0].mxu0
  %v643 = vadd.f32 %v490, %v642
  %v644 = vpop.f32.mrb[0].mxu0
  %645 = vmatprep.mubr.bf16.mxu0 0
  %646 = vmatmul.mubr.bf16.gmra.mrb[0].mxu0 %v597
  %v647 = vpop.f32.mrb[0].mxu0
  %v648 = vadd.f32 %v490, %v647
  %v649 = vpop.f32.mrb[0].mxu0
  %v650 = vpop.f32.mrb[0].mxu0
  %v651 = vadd.f32 %v490, %v650
  %v652 = vpop.f32.mrb[0].mxu0
  %653 = vmatprep.mubr.bf16.mxu0 0
  %654 = vmatmul.mubr.bf16.gmra.mrb[0].mxu0 %v600
  %v655 = vpop.f32.mrb[0].mxu0
  %v656 = vadd.f32 %v490, %v655
  %v657 = vpop.f32.mrb[0].mxu0
  %v658 = vpop.f32.mrb[0].mxu0
  %v659 = vadd.f32 %v490, %v658
  %v660 = vpop.f32.mrb[0].mxu0
  %661 = vmatprep.mubr.bf16.mxu0 0
  %662 = vmatmul.mubr.bf16.gmra.mrb[0].mxu0 %v603
  %v663 = vpop.f32.mrb[0].mxu0
  %v664 = vadd.f32 %v490, %v663
  %v665 = vpop.f32.mrb[0].mxu0
  %v666 = vpop.f32.mrb[0].mxu0
  %v667 = vadd.f32 %v490, %v666
  %v668 = vpop.f32.mrb[0].mxu0
  %669 = vdwg.mxu0
  %v670 = vmax.f32 %v640, 0.0
  %v671 = vmax.f32 %v643, 0.0
  %v672 = vmax.f32 %v648, 0.0
  %v673 = vmax.f32 %v651, 0.0
  %v674 = vmax.f32 %v656, 0.0
  %v675 = vmax.f32 %v659, 0.0
  %v676 = vmax.f32 %v664, 0.0
  %v677 = vmax.f32 %v667, 0.0
  %v678 = vpack.c.bf16 %v671, %v670
  %v679 = vpack.c.bf16 %v673, %v672
  %v680 = vpack.c.bf16 %v675, %v674
  %v681 = vpack.c.bf16 %v677, %v676
  %s682 = scalar_lea.vmem %s3, 32
  %v683 = vld [vmem:[%s682] sm:$0xf]
  %v684 = vld [vmem:[%s682 + $0x4] sm:$0xf]
  %v685 = vld [vmem:[%s682 + $0x8] sm:$0xf]
  %v686 = vld [vmem:[%s682 + $0xc] sm:$0xf]
  %s687 = scalar_lea.vmem %s4, 2
  %v688 = vld [vmem:[%s687] sm:$0x1]
  %v690 = vlaneseq
  %v691 = vshrl.u32 %v690, 7
  %v692 = vsub.s32 0, %v691
  %v693 = vrot.slane %v688, %v692
  %v699 = vunpack.c.l.b16 %v683
  %v700 = vunpack.c.l.b16 %v684
  %v701 = vunpack.c.l.b16 %v685
  %v702 = vunpack.c.l.b16 %v686
  %v703 = vpack.c.b16 %v700, %v699
  %v704 = vpack.c.b16 %v702, %v701
  %v708 = vsel %vm300, %v589, 0
  %v711 = vsel %vm300, %v590, 0
  %v714 = vsel %vm300, %v591, 0
  %v717 = vsel %vm300, %v592, 0
  %719 = vmatprep.subr.bf16.mxu0 0
  %720 = vmatpush1.bf16.msra.mxu0 %v703
  %721 = vmatprep.subr.bf16.mxu0 0
  %722 = vmatpush1.bf16.msra.mxu0 %v704
  %723 = vmatprep.subr.bf16.mxu0 0
  %724 = vmatpush1.bf16.msra.mxu0 0
  %725 = vmatprep.subr.bf16.mxu0 0
  %726 = vmatpush1.bf16.msra.mxu0 0
  %727 = vmatprep.subr.bf16.mxu0 0
  %728 = vmatpush1.bf16.msra.mxu0 0
  %729 = vmatprep.subr.bf16.mxu0 0
  %730 = vmatpush1.bf16.msra.mxu0 0
  %731 = vmatprep.subr.bf16.mxu0 0
  %732 = vmatpush1.bf16.msra.mxu0 0
  %733 = vmatprep.subr.bf16.mxu0 0
  %734 = vmatpush1.bf16.msra.mxu0 0
  %735 = vmatprep.subr.bf16.mxu0 0
  %736 = vmatpush1.bf16.msra.mxu0 0
  %737 = vmatprep.subr.bf16.mxu0 0
  %738 = vmatpush1.bf16.msra.mxu0 0
  %739 = vmatprep.subr.bf16.mxu0 0
  %740 = vmatpush1.bf16.msra.mxu0 0
  %741 = vmatprep.subr.bf16.mxu0 0
  %742 = vmatpush1.bf16.msra.mxu0 0
  %743 = vmatprep.subr.bf16.mxu0 0
  %744 = vmatpush1.bf16.msra.mxu0 0
  %745 = vmatprep.subr.bf16.mxu0 0
  %746 = vmatpush1.bf16.msra.mxu0 0
  %747 = vmatprep.subr.bf16.mxu0 0
  %748 = vmatpush1.bf16.msra.mxu0 0
  %749 = vmatprep.subr.bf16.mxu0 0
  %750 = vmatpush1.bf16.msra.mxu0 0
  %751 = vmatprep.mubr.bf16.mxu0 0
  %752 = vmatmul.mubr.bf16.gmra.mrb[0].mxu0 %v708
  %v753 = vpop.f32.mrb[0].mxu0
  %v754 = vadd.f32 %v693, %v753
  %v755 = vpop.f32.mrb[0].mxu0
  %v756 = vpop.f32.mrb[0].mxu0
  %v757 = vadd.f32 %v693, %v756
  %v758 = vpop.f32.mrb[0].mxu0
  %759 = vmatprep.mubr.bf16.mxu0 0
  %760 = vmatmul.mubr.bf16.gmra.mrb[0].mxu0 %v711
  %v761 = vpop.f32.mrb[0].mxu0
  %v762 = vadd.f32 %v693, %v761
  %v763 = vpop.f32.mrb[0].mxu0
  %v764 = vpop.f32.mrb[0].mxu0
  %v765 = vadd.f32 %v693, %v764
  %v766 = vpop.f32.mrb[0].mxu0
  %767 = vmatprep.mubr.bf16.mxu0 0
  %768 = vmatmul.mubr.bf16.gmra.mrb[0].mxu0 %v714
  %v769 = vpop.f32.mrb[0].mxu0
  %v770 = vadd.f32 %v693, %v769
  %v771 = vpop.f32.mrb[0].mxu0
  %v772 = vpop.f32.mrb[0].mxu0
  %v773 = vadd.f32 %v693, %v772
  %v774 = vpop.f32.mrb[0].mxu0
  %775 = vmatprep.mubr.bf16.mxu0 0
  %776 = vmatmul.mubr.bf16.gmra.mrb[0].mxu0 %v717
  %v777 = vpop.f32.mrb[0].mxu0
  %v778 = vadd.f32 %v693, %v777
  %v779 = vpop.f32.mrb[0].mxu0
  %v780 = vpop.f32.mrb[0].mxu0
  %v781 = vadd.f32 %v693, %v780
  %v782 = vpop.f32.mrb[0].mxu0
  %783 = vdwg.mxu0
  %v784 = vmax.f32 %v754, 0.0
  %v785 = vmax.f32 %v757, 0.0
  %v786 = vmax.f32 %v762, 0.0
  %v787 = vmax.f32 %v765, 0.0
  %v788 = vmax.f32 %v770, 0.0
  %v789 = vmax.f32 %v773, 0.0
  %v790 = vmax.f32 %v778, 0.0
  %v791 = vmax.f32 %v781, 0.0
  %v792 = vpack.c.bf16 %v785, %v784
  %v793 = vpack.c.bf16 %v787, %v786
  %v794 = vpack.c.bf16 %v789, %v788
  %v795 = vpack.c.bf16 %v791, %v790
  %v797 = vsel %vm300, %v678, 0
  %v800 = vsel %vm300, %v679, 0
  %v803 = vsel %vm300, %v680, 0
  %v806 = vsel %vm300, %v681, 0
  %808 = vmatprep.subr.bf16.mxu0 0
  %809 = vmatpush1.bf16.msra.mxu0 %v703
  %810 = vmatprep.subr.bf16.mxu0 0
  %811 = vmatpush1.bf16.msra.mxu0 %v704
  %812 = vmatprep.subr.bf16.mxu0 0
  %813 = vmatpush1.bf16.msra.mxu0 0
  %814 = vmatprep.subr.bf16.mxu0 0
  %815 = vmatpush1.bf16.msra.mxu0 0
  %816 = vmatprep.subr.bf16.mxu0 0
  %817 = vmatpush1.bf16.msra.mxu0 0
  %818 = vmatprep.subr.bf16.mxu0 0
  %819 = vmatpush1.bf16.msra.mxu0 0
  %820 = vmatprep.subr.bf16.mxu0 0
  %821 = vmatpush1.bf16.msra.mxu0 0
  %822 = vmatprep.subr.bf16.mxu0 0
  %823 = vmatpush1.bf16.msra.mxu0 0
  %824 = vmatprep.subr.bf16.mxu0 0
  %825 = vmatpush1.bf16.msra.mxu0 0
  %826 = vmatprep.subr.bf16.mxu0 0
  %827 = vmatpush1.bf16.msra.mxu0 0
  %828 = vmatprep.subr.bf16.mxu0 0
  %829 = vmatpush1.bf16.msra.mxu0 0
  %830 = vmatprep.subr.bf16.mxu0 0
  %831 = vmatpush1.bf16.msra.mxu0 0
  %832 = vmatprep.subr.bf16.mxu0 0
  %833 = vmatpush1.bf16.msra.mxu0 0
  %834 = vmatprep.subr.bf16.mxu0 0
  %835 = vmatpush1.bf16.msra.mxu0 0
  %836 = vmatprep.subr.bf16.mxu0 0
  %837 = vmatpush1.bf16.msra.mxu0 0
  %838 = vmatprep.subr.bf16.mxu0 0
  %839 = vmatpush1.bf16.msra.mxu0 0
  %840 = vmatprep.mubr.bf16.mxu0 0
  %841 = vmatmul.mubr.bf16.gmra.mrb[0].mxu0 %v797
  %v842 = vpop.f32.mrb[0].mxu0
  %v843 = vadd.f32 %v693, %v842
  %v844 = vpop.f32.mrb[0].mxu0
  %v845 = vpop.f32.mrb[0].mxu0
  %v846 = vadd.f32 %v693, %v845
  %v847 = vpop.f32.mrb[0].mxu0
  %848 = vmatprep.mubr.bf16.mxu0 0
  %849 = vmatmul.mubr.bf16.gmra.mrb[0].mxu0 %v800
  %v850 = vpop.f32.mrb[0].mxu0
  %v851 = vadd.f32 %v693, %v850
  %v852 = vpop.f32.mrb[0].mxu0
  %v853 = vpop.f32.mrb[0].mxu0
  %v854 = vadd.f32 %v693, %v853
  %v855 = vpop.f32.mrb[0].mxu0
  %856 = vmatprep.mubr.bf16.mxu0 0
  %857 = vmatmul.mubr.bf16.gmra.mrb[0].mxu0 %v803
  %v858 = vpop.f32.mrb[0].mxu0
  %v859 = vadd.f32 %v693, %v858
  %v860 = vpop.f32.mrb[0].mxu0
  %v861 = vpop.f32.mrb[0].mxu0
  %v862 = vadd.f32 %v693, %v861
  %v863 = vpop.f32.mrb[0].mxu0
  %864 = vmatprep.mubr.bf16.mxu0 0
  %865 = vmatmul.mubr.bf16.gmra.mrb[0].mxu0 %v806
  %v866 = vpop.f32.mrb[0].mxu0
  %v867 = vadd.f32 %v693, %v866
  %v868 = vpop.f32.mrb[0].mxu0
  %v869 = vpop.f32.mrb[0].mxu0
  %v870 = vadd.f32 %v693, %v869
  %v871 = vpop.f32.mrb[0].mxu0
  %872 = vdwg.mxu0
  %v873 = vmax.f32 %v843, 0.0
  %v874 = vmax.f32 %v846, 0.0
  %v875 = vmax.f32 %v851, 0.0
  %v876 = vmax.f32 %v854, 0.0
  %v877 = vmax.f32 %v859, 0.0
  %v878 = vmax.f32 %v862, 0.0
  %v879 = vmax.f32 %v867, 0.0
  %v880 = vmax.f32 %v870, 0.0
  %v881 = vpack.c.bf16 %v874, %v873
  %v882 = vpack.c.bf16 %v876, %v875
  %v883 = vpack.c.bf16 %v878, %v877
  %v884 = vpack.c.bf16 %v880, %v879
  %v885 = vld [vmem:[%s5] sm:$0xf]
  %v886 = vld [vmem:[%s5 + $0x4] sm:$0xf]
  %v887 = vld [vmem:[%s5 + $0x8] sm:$0xf]
  %v888 = vld [vmem:[%s5 + $0xc] sm:$0xf]
  %v889 = vld [vmem:[%s6] sm:$0x1]
  %v891 = vlaneseq
  %v892 = vshrl.u32 %v891, 7
  %v893 = vsub.s32 0, %v892
  %v894 = vrot.slane %v889, %v893
  %v900 = vunpack.c.l.b16 %v885
  %v901 = vunpack.c.l.b16 %v886
  %v902 = vunpack.c.l.b16 %v887
  %v903 = vunpack.c.l.b16 %v888
  %v904 = vpack.c.b16 %v901, %v900
  %v905 = vpack.c.b16 %v903, %v902
  %v909 = vsel %vm300, %v792, 0
  %v912 = vsel %vm300, %v793, 0
  %v915 = vsel %vm300, %v794, 0
  %v918 = vsel %vm300, %v795, 0
  %920 = vmatprep.subr.bf16.mxu0 0
  %921 = vmatpush1.bf16.msra.mxu0 %v904
  %922 = vmatprep.subr.bf16.mxu0 0
  %923 = vmatpush1.bf16.msra.mxu0 %v905
  %924 = vmatprep.subr.bf16.mxu0 0
  %925 = vmatpush1.bf16.msra.mxu0 0
  %926 = vmatprep.subr.bf16.mxu0 0
  %927 = vmatpush1.bf16.msra.mxu0 0
  %928 = vmatprep.subr.bf16.mxu0 0
  %929 = vmatpush1.bf16.msra.mxu0 0
  %930 = vmatprep.subr.bf16.mxu0 0
  %931 = vmatpush1.bf16.msra.mxu0 0
  %932 = vmatprep.subr.bf16.mxu0 0
  %933 = vmatpush1.bf16.msra.mxu0 0
  %934 = vmatprep.subr.bf16.mxu0 0
  %935 = vmatpush1.bf16.msra.mxu0 0
  %936 = vmatprep.subr.bf16.mxu0 0
  %937 = vmatpush1.bf16.msra.mxu0 0
  %938 = vmatprep.subr.bf16.mxu0 0
  %939 = vmatpush1.bf16.msra.mxu0 0
  %940 = vmatprep.subr.bf16.mxu0 0
  %941 = vmatpush1.bf16.msra.mxu0 0
  %942 = vmatprep.subr.bf16.mxu0 0
  %943 = vmatpush1.bf16.msra.mxu0 0
  %944 = vmatprep.subr.bf16.mxu0 0
  %945 = vmatpush1.bf16.msra.mxu0 0
  %946 = vmatprep.subr.bf16.mxu0 0
  %947 = vmatpush1.bf16.msra.mxu0 0
  %948 = vmatprep.subr.bf16.mxu0 0
  %949 = vmatpush1.bf16.msra.mxu0 0
  %950 = vmatprep.subr.bf16.mxu0 0
  %951 = vmatpush1.bf16.msra.mxu0 0
  %952 = vmatprep.mubr.bf16.mxu0 0
  %953 = vmatmul.mubr.bf16.gmra.mrb[0].mxu0 %v909
  %v954 = vpop.f32.mrb[0].mxu0
  %v955 = vadd.f32 %v894, %v954
  %v956 = vpop.f32.mrb[0].mxu0
  %v957 = vpop.f32.mrb[0].mxu0
  %v958 = vadd.f32 %v894, %v957
  %v959 = vpop.f32.mrb[0].mxu0
  %960 = vmatprep.mubr.bf16.mxu0 0
  %961 = vmatmul.mubr.bf16.gmra.mrb[0].mxu0 %v912
  %v962 = vpop.f32.mrb[0].mxu0
  %v963 = vadd.f32 %v894, %v962
  %v964 = vpop.f32.mrb[0].mxu0
  %v965 = vpop.f32.mrb[0].mxu0
  %v966 = vadd.f32 %v894, %v965
  %v967 = vpop.f32.mrb[0].mxu0
  %968 = vmatprep.mubr.bf16.mxu0 0
  %969 = vmatmul.mubr.bf16.gmra.mrb[0].mxu0 %v915
  %v970 = vpop.f32.mrb[0].mxu0
  %v971 = vadd.f32 %v894, %v970
  %v972 = vpop.f32.mrb[0].mxu0
  %v973 = vpop.f32.mrb[0].mxu0
  %v974 = vadd.f32 %v894, %v973
  %v975 = vpop.f32.mrb[0].mxu0
  %976 = vmatprep.mubr.bf16.mxu0 0
  %977 = vmatmul.mubr.bf16.gmra.mrb[0].mxu0 %v918
  %v978 = vpop.f32.mrb[0].mxu0
  %v979 = vadd.f32 %v894, %v978
  %v980 = vpop.f32.mrb[0].mxu0
  %v981 = vpop.f32.mrb[0].mxu0
  %v982 = vadd.f32 %v894, %v981
  %v983 = vpop.f32.mrb[0].mxu0
  %984 = vdwg.mxu0
  %v986 = vsel %vm300, %v881, 0
  %v989 = vsel %vm300, %v882, 0
  %v992 = vsel %vm300, %v883, 0
  %v995 = vsel %vm300, %v884, 0
  %997 = vmatprep.subr.bf16.mxu0 0
  %998 = vmatpush1.bf16.msra.mxu0 %v904
  %999 = vmatprep.subr.bf16.mxu0 0
  %1000 = vmatpush1.bf16.msra.mxu0 %v905
  %1001 = vmatprep.subr.bf16.mxu0 0
  %1002 = vmatpush1.bf16.msra.mxu0 0
  %1003 = vmatprep.subr.bf16.mxu0 0
  %1004 = vmatpush1.bf16.msra.mxu0 0
  %1005 = vmatprep.subr.bf16.mxu0 0
  %1006 = vmatpush1.bf16.msra.mxu0 0
  %1007 = vmatprep.subr.bf16.mxu0 0
  %1008 = vmatpush1.bf16.msra.mxu0 0
  %1009 = vmatprep.subr.bf16.mxu0 0
  %1010 = vmatpush1.bf16.msra.mxu0 0
  %1011 = vmatprep.subr.bf16.mxu0 0
  %1012 = vmatpush1.bf16.msra.mxu0 0
  %1013 = vmatprep.subr.bf16.mxu0 0
  %1014 = vmatpush1.bf16.msra.mxu0 0
  %1015 = vmatprep.subr.bf16.mxu0 0
  %1016 = vmatpush1.bf16.msra.mxu0 0
  %1017 = vmatprep.subr.bf16.mxu0 0
  %1018 = vmatpush1.bf16.msra.mxu0 0
  %1019 = vmatprep.subr.bf16.mxu0 0
  %1020 = vmatpush1.bf16.msra.mxu0 0
  %1021 = vmatprep.subr.bf16.mxu0 0
  %1022 = vmatpush1.bf16.msra.mxu0 0
  %1023 = vmatprep.subr.bf16.mxu0 0
  %1024 = vmatpush1.bf16.msra.mxu0 0
  %1025 = vmatprep.subr.bf16.mxu0 0
  %1026 = vmatpush1.bf16.msra.mxu0 0
  %1027 = vmatprep.subr.bf16.mxu0 0
  %1028 = vmatpush1.bf16.msra.mxu0 0
  %1029 = vmatprep.mubr.bf16.mxu0 0
  %1030 = vmatmul.mubr.bf16.gmra.mrb[0].mxu0 %v986
  %v1031 = vpop.f32.mrb[0].mxu0
  %v1032 = vadd.f32 %v894, %v1031
  %v1033 = vpop.f32.mrb[0].mxu0
  %v1034 = vpop.f32.mrb[0].mxu0
  %v1035 = vadd.f32 %v894, %v1034
  %v1036 = vpop.f32.mrb[0].mxu0
  %1037 = vmatprep.mubr.bf16.mxu0 0
  %1038 = vmatmul.mubr.bf16.gmra.mrb[0].mxu0 %v989
  %v1039 = vpop.f32.mrb[0].mxu0
  %v1040 = vadd.f32 %v894, %v1039
  %v1041 = vpop.f32.mrb[0].mxu0
  %v1042 = vpop.f32.mrb[0].mxu0
  %v1043 = vadd.f32 %v894, %v1042
  %v1044 = vpop.f32.mrb[0].mxu0
  %1045 = vmatprep.mubr.bf16.mxu0 0
  %1046 = vmatmul.mubr.bf16.gmra.mrb[0].mxu0 %v992
  %v1047 = vpop.f32.mrb[0].mxu0
  %v1048 = vadd.f32 %v894, %v1047
  %v1049 = vpop.f32.mrb[0].mxu0
  %v1050 = vpop.f32.mrb[0].mxu0
  %v1051 = vadd.f32 %v894, %v1050
  %v1052 = vpop.f32.mrb[0].mxu0
  %1053 = vmatprep.mubr.bf16.mxu0 0
  %1054 = vmatmul.mubr.bf16.gmra.mrb[0].mxu0 %v995
  %v1055 = vpop.f32.mrb[0].mxu0
  %v1056 = vadd.f32 %v894, %v1055
  %v1057 = vpop.f32.mrb[0].mxu0
  %v1058 = vpop.f32.mrb[0].mxu0
  %v1059 = vadd.f32 %v894, %v1058
  %v1060 = vpop.f32.mrb[0].mxu0
  %1061 = vdwg.mxu0
  %vm1062 = vcmask 64512
  %1063 = vst.msk [vmem:[%s7] sm:$0xff] %vm1062, %v955
  %1064 = vst.msk [vmem:[%s7 + $0x8] sm:$0xff] %vm1062, %v958
  %1065 = vst.msk [vmem:[%s7 + $0x10] sm:$0xff] %vm1062, %v963
  %1066 = vst.msk [vmem:[%s7 + $0x18] sm:$0xff] %vm1062, %v966
  %1067 = vst.msk [vmem:[%s7 + $0x20] sm:$0xff] %vm1062, %v971
  %1068 = vst.msk [vmem:[%s7 + $0x28] sm:$0xff] %vm1062, %v974
  %1069 = vst.msk [vmem:[%s7 + $0x30] sm:$0xff] %vm1062, %v979
  %1070 = vst.msk [vmem:[%s7 + $0x38] sm:$0xff] %vm1062, %v982
  %1071 = vst.msk [vmem:[%s7 + $0x40] sm:$0xff] %vm1062, %v1032
  %1072 = vst.msk [vmem:[%s7 + $0x48] sm:$0xff] %vm1062, %v1035
  %1073 = vst.msk [vmem:[%s7 + $0x50] sm:$0xff] %vm1062, %v1040
  %1074 = vst.msk [vmem:[%s7 + $0x58] sm:$0xff] %vm1062, %v1043
  %1075 = vst.msk [vmem:[%s7 + $0x60] sm:$0xff] %vm1062, %v1048
  %1076 = vst.msk [vmem:[%s7 + $0x68] sm:$0xff] %vm1062, %v1051
  %1077 = vst.msk [vmem:[%s7 + $0x70] sm:$0xff] %vm1062, %v1056
  %1078 = vst.msk [vmem:[%s7 + $0x78] sm:$0xff] %vm1062, %v1059
  // Predicated region
  $region30: #{tpu_custom_call.1} parent=0 // pred_check
    _
  $region31: #{tpu_custom_call.1} parent=0 // pred_check_branch
    %1080 = sbr.rel (0) target = $region33
  $region32: #{tpu_custom_call.1} parent=0 // pred_region
    _
  $region33: #{tpu_custom_call.1} parent=0 // pred_fallthru
    _
  // Predicated region
  $region34: #{tpu_custom_call.1} parent=0 // pred_check
    _
  $region35: #{tpu_custom_call.1} parent=0 // pred_check_branch
    %1082 = sbr.rel (0) target = $region37
  $region36: #{tpu_custom_call.1} parent=0 // pred_region
    _
  $region37: #{tpu_custom_call.1} parent=0 // pred_fallthru
    _

</llo_original>
